<compile_context>
chip_gen: v5e
topology: v5e:2x2
jax: 0.10.0
libtpu: 0.0.40
codegen_flags: <defaults>
</compile_context>

<pallas_src>
import math

import jax
import jax.numpy as jnp
from jax.experimental import pallas as pl
from jax.experimental.pallas import tpu as pltpu


# ------------------------------------------------------------------ per-generation sizing

def _tpu_vmem_capacity_bytes():
    try:
        return int(pltpu.get_tpu_info().vmem_capacity_bytes)
    except Exception:                               # conservative default (v7x-sized)
        return 64 << 20


_VMEM_CAP = _tpu_vmem_capacity_bytes()
_SMALL_VMEM = _VMEM_CAP <= (64 << 20)               # v7x (64 MiB) vs v5e/v6e (128 MiB)
_VMEM_BUDGET = (24 << 20) if _SMALL_VMEM else (56 << 20)   # live double-buffered blocks
_VMEM_LIMIT_CAP = max(_VMEM_CAP - (16 << 20), 32 << 20)    # leave Mosaic scratch headroom
_MAX_ROW_TILE = 512 if _SMALL_VMEM else 1024        # rows per block (multiple of 8)
_MAX_LANE_TILE = 2048                               # lanes per block (multiple of 128)
_FAST_PATH_BYTES = 128 << 10                        # below this, plain jnp beats launch cost


def _lane_tile(lanes):
    """Lane-dim block extent: full dim if small, else a large multiple of 128."""
    if lanes <= _MAX_LANE_TILE:
        return lanes                      # full extent is always a legal block dim
    return _MAX_LANE_TILE                 # multiple of 128; trailing block may be partial


def _row_tile(rows, tile_l, n_full, n_rowvec, itemsize):
    """Rows per block so the double-buffered live blocks fit the generation budget.
    Rowvec operands ((rows, 1) gamma/bias columns) count at their true 1-lane footprint."""
    bytes_per_row = max((n_full * tile_l + n_rowvec) * itemsize, 1)
    max_rows = max((_VMEM_BUDGET // 2) // bytes_per_row, 8)
    tile_r = min(rows, _MAX_ROW_TILE, max_rows)
    if tile_r < rows:                     # not full extent -> must be a multiple of 8
        tile_r = max((tile_r // 8) * 8, 8)
    return tile_r


def _mosaic_params(grid_ndim, live_block_bytes):
    """Parallel semantics + scoped-VMEM limit (double buffers + headroom), capped well
    below physical capacity so Mosaic keeps room for its own scratch/bookkeeping."""
    need = 2 * live_block_bytes + (8 << 20)
    limit = int(min(max(need, 32 << 20), _VMEM_LIMIT_CAP))
    return pltpu.CompilerParams(
        dimension_semantics=("parallel",) * grid_ndim,
        vmem_limit_bytes=limit)


def _grid_and_maps(grid_r, grid_l):
    """Order the grid so the larger extent leads: v7x megacore shards the leading
    parallel axis across its two TensorCores, so the big axis must not have extent 1."""
    if grid_l > grid_r:
        grid = (grid_l, grid_r)
        full_map = lambda j, i: (i, j)
        row_map = lambda j, i: (i, 0)
    else:
        grid = (grid_r, grid_l)
        full_map = lambda i, j: (i, j)
        row_map = lambda i, j: (i, 0)
    return grid, full_map, row_map


def _dense_lanes(total):
    """Largest lane extent (multiple of 128, <= _MAX_LANE_TILE) that divides `total`."""
    for lanes in (2048, 1024, 512, 384, 256, 128):
        if lanes <= _MAX_LANE_TILE and total % lanes == 0:
            return lanes
    return None


# ----------------------------------------------------------------------------- kernels

def _concat_dma_kernel(channels, serialize):
    """Pure data movement: one HBM->HBM DMA per input into its static channel slice of
    the output. No VMEM staging, no vector loads/stores. `serialize=True` when channel
    boundaries are not sublane-aligned, so partial-tile writes can never overlap."""
    n_in = len(channels)

    def kernel(*refs):
        in_refs = refs[:n_in]
        out_ref = refs[n_in]
        sem = refs[n_in + 1]
        pending = []
        off = 0
        for idx, (r, c) in enumerate(zip(in_refs, channels)):
            cp = pltpu.make_async_copy(r, out_ref.at[:, off:off + c, :], sem.at[idx])
            cp.start()
            if serialize:
                cp.wait()
            else:
                pending.append(cp)
            off += c
        for cp in pending:
            cp.wait()
    return kernel


def _elementwise_kernel(op_name, n_inputs, acc_dtype):
    """Sum / mul / mean over n_inputs blocks."""
    inv_n = 1.0 / n_inputs

    def kernel(*refs):
        in_refs, out_ref = refs[:-1], refs[-1]
        acc = in_refs[0][...].astype(acc_dtype)
        for r in in_refs[1:]:
            v = r[...].astype(acc_dtype)      # (tile_r, 1) operands VPU-broadcast over lanes
            acc = acc * v if op_name == 'mul' else acc + v
        if op_name == 'mean':
            acc = acc * inv_n
        out_ref[...] = jnp.broadcast_to(acc.astype(out_ref.dtype), out_ref.shape)
    return kernel


def _drop_path_kernel(a_ref, x_ref, g_ref, out_ref):
    """Eval-mode drop_path: out = a + gamma * x. gamma is a (tile_r, 1) column broadcast
    over lanes on the VPU. Computed in the output dtype (native bf16 on v6e/v7x)."""
    dt = out_ref.dtype
    out_ref[...] = a_ref[...].astype(dt) + g_ref[...].astype(dt) * x_ref[...].astype(dt)


# ---------------------------------------------------------------------------- wrappers

def pallas_concat(arrays):
    arrays = [jnp.asarray(a) for a in arrays]
    n = arrays[0].shape[0]
    spatial = tuple(arrays[0].shape[2:])
    for a in arrays[1:]:
        if a.shape[0] != n or tuple(a.shape[2:]) != spatial:
            # TODO(synk): spatial_resize (zero-pad / center-crop) glue not implemented;
            # concat inputs must already share batch and spatial shapes.
            raise ValueError(f'concat inputs must share batch/spatial shapes, '
                             f'got {[tuple(a.shape) for a in arrays]}')
    channels = [a.shape[1] for a in arrays]
    c_out = sum(channels)
    out_dtype = jnp.result_type(*arrays)
    itemsize = jnp.dtype(out_dtype).itemsize
    hw = max(math.prod(spatial), 1)

    if n * c_out * hw * itemsize < _FAST_PATH_BYTES:
        # Tiny activation: custom-call launch overhead dominates; let XLA fuse it.
        return jnp.concatenate([a.astype(out_dtype) for a in arrays], axis=1)

    # Sublane packing for this dtype (8 rows for 32-bit, 16 for 16-bit, 32 for 8-bit);
    # if any internal channel boundary is misaligned, serialize the DMAs so two copies
    # never touch the same destination tile concurrently.
    align = max(32 // itemsize, 8)
    off, serialize = 0, False
    for c in channels[:-1]:
        off += c
        serialize |= (off % align) != 0

    flats = [a.astype(out_dtype).reshape(n, c, hw) for a, c in zip(arrays, channels)]
    out = pl.pallas_call(
        _concat_dma_kernel(tuple(channels), serialize),
        out_shape=jax.ShapeDtypeStruct((n, c_out, hw), out_dtype),
        in_specs=[pl.BlockSpec(memory_space=pl.ANY)] * len(flats),
        out_specs=pl.BlockSpec(memory_space=pl.ANY),
        scratch_shapes=[pltpu.SemaphoreType.DMA((len(flats),))],
    )(*flats)
    return out.reshape((n, c_out) + spatial)


def pallas_elementwise(op_name, arrays):
    arrays = [jnp.asarray(a) for a in arrays]
    out_shape = jnp.broadcast_shapes(*[tuple(a.shape) for a in arrays])
    out_dtype = jnp.result_type(*arrays)
    n_in = len(arrays)

    # Accumulation dtype: native dtype for 2-operand sum/mul (bf16 VALU on v6e/v7x),
    # f32 for mean and >2-operand floating sums (avoid chained low-precision adds).
    if op_name == 'mean':
        acc_dtype = jnp.float32
        if not jnp.issubdtype(out_dtype, jnp.floating):
            # TODO(synk): torch.mean(list) in the reference is a bug; intended semantics
            # implemented as a float average, so integer inputs are promoted to float32.
            out_dtype = jnp.dtype(jnp.float32)
    elif jnp.issubdtype(out_dtype, jnp.floating) and n_in > 2:
        acc_dtype = jnp.float32
    else:
        acc_dtype = out_dtype

    itemsize = jnp.dtype(out_dtype).itemsize
    total = max(math.prod(out_shape), 1)

    if total * itemsize < _FAST_PATH_BYTES:
        acc = arrays[0].astype(acc_dtype)
        for a in arrays[1:]:
            acc = acc * a.astype(acc_dtype) if op_name == 'mul' else acc + a.astype(acc_dtype)
        if op_name == 'mean':
            acc = acc * (1.0 / n_in)
        return jnp.broadcast_to(acc.astype(out_dtype), out_shape)

    ndim = len(out_shape)
    same_shape = all(tuple(a.shape) == tuple(out_shape) for a in arrays)
    dense = _dense_lanes(total) if same_shape else None

    if dense is not None:
        # All operands share the output shape: flatten to a fully lane-dense 2-D shape so
        # every store is an unmasked vst even when H*W isn't a multiple of 128.
        lanes = dense
        rows = total // lanes
        flats = [a.reshape(rows, lanes) for a in arrays]
        is_rowvec = [False] * n_in
        n_dim = c_dim = None
    else:
        if ndim >= 3:
            n_dim, c_dim = out_shape[0], out_shape[1]
            rows, lanes = n_dim * c_dim, max(math.prod(out_shape[2:]), 1)
        elif ndim == 2:
            n_dim, c_dim = None, None
            rows, lanes = out_shape
        else:
            n_dim, c_dim = None, None
            rows, lanes = 1, (out_shape[0] if ndim == 1 else 1)

        flats, is_rowvec = [], []
        for a in arrays:
            shp = (1,) * (ndim - a.ndim) + tuple(a.shape)
            a = a.reshape(shp)
            if shp == tuple(out_shape):
                flats.append(a.reshape(rows, lanes))
                is_rowvec.append(False)
            elif (ndim >= 3 and all(d == 1 for d in shp[2:])
                  and shp[0] in (1, n_dim) and shp[1] in (1, c_dim)):
                # per-channel / per-batch / scalar operand: tiny (rows, 1) column that is
                # broadcast over lanes in-kernel instead of materialized in HBM.
                col = jnp.broadcast_to(a.reshape(shp[0], shp[1]),
                                       (n_dim, c_dim)).reshape(rows, 1)
                flats.append(col)
                is_rowvec.append(True)
            else:
                # TODO(synk): uncommon broadcast pattern falls back to a materialized broadcast.
                flats.append(jnp.broadcast_to(a, out_shape).reshape(rows, lanes))
                is_rowvec.append(False)

    n_rowvec = sum(is_rowvec)
    n_full = (n_in - n_rowvec) + 1                  # full-width inputs + output
    tile_l = _lane_tile(lanes)
    tile_r = _row_tile(rows, tile_l, n_full, n_rowvec, itemsize)
    grid_r, grid_l = pl.cdiv(rows, tile_r), pl.cdiv(lanes, tile_l)
    grid, full_map, row_map = _grid_and_maps(grid_r, grid_l)

    in_specs = [pl.BlockSpec((tile_r, 1), row_map) if rv
                else pl.BlockSpec((tile_r, tile_l), full_map) for rv in is_rowvec]
    live_bytes = (n_full * tile_l + n_rowvec) * tile_r * itemsize

    # TODO(synk): input_output_aliases (donate input 0) skipped: inputs stay user-visible
    # in eager mode, so aliasing would be unsafe / force an extra copy.
    out = pl.pallas_call(
        _elementwise_kernel(op_name, n_in, acc_dtype),
        out_shape=jax.ShapeDtypeStruct((rows, lanes), out_dtype),
        grid=grid,
        in_specs=in_specs,
        out_specs=pl.BlockSpec((tile_r, tile_l), full_map),
        compiler_params=_mosaic_params(len(grid), live_bytes),
    )(*flats)
    return out.reshape(out_shape)


def pallas_drop_path(a, x, gamma):
    a = jnp.asarray(a)
    x = jnp.asarray(x)
    if a.shape != x.shape:
        raise ValueError(f'drop_path inputs must share shape, got {a.shape} vs {x.shape}')
    out_dtype = jnp.result_type(a, x, gamma)
    itemsize = jnp.dtype(out_dtype).itemsize
    n, c = x.shape[0], x.shape[1]
    rows = n * c
    lanes = max(math.prod(x.shape[2:]), 1)

    if rows * lanes * itemsize < _FAST_PATH_BYTES:
        return (a + gamma.astype(out_dtype) * x).astype(out_dtype)

    a2 = a.reshape(rows, lanes)
    x2 = x.reshape(rows, lanes)
    # gamma is per-channel: tiny (N*C, 1) column; its BlockSpec follows only the row grid
    # axis (not re-DMAed per lane tile) and broadcasts over lanes on the VPU.
    g2 = jnp.broadcast_to(gamma.reshape(1, c), (n, c)).reshape(rows, 1).astype(out_dtype)

    tile_l = _lane_tile(lanes)
    tile_r = _row_tile(rows, tile_l, 3, 1, itemsize)   # a, x, out full-width + gamma column
    grid_r, grid_l = pl.cdiv(rows, tile_r), pl.cdiv(lanes, tile_l)
    grid, full_map, row_map = _grid_and_maps(grid_r, grid_l)
    live_bytes = (3 * tile_l + 1) * tile_r * itemsize

    out = pl.pallas_call(
        _drop_path_kernel,
        out_shape=jax.ShapeDtypeStruct((rows, lanes), out_dtype),
        grid=grid,
        in_specs=[pl.BlockSpec((tile_r, tile_l), full_map),
                  pl.BlockSpec((tile_r, tile_l), full_map),
                  pl.BlockSpec((tile_r, 1), row_map)],
        out_specs=pl.BlockSpec((tile_r, tile_l), full_map),
        compiler_params=_mosaic_params(len(grid), live_bytes),
    )(a2, x2, g2)
    return out.reshape(x.shape)


# ----------------------------------------------------------------------------- module

class Combine:
    """JAX/Pallas port of the PyTorch Combine module (inference semantics)."""
    OPS = {'concat': ['concat', 'cat', '|'],
           'sum': ['sum', 'plus', '+'],
           'mul': ['multi', 'mul', '*'],
           'mean': ['average', 'avg', 'mean'],
           'drop_path': ['drop_path', 'droppath', 'dp', '!']}
    OPS = {alias: method for method, aliases in OPS.items() for alias in aliases}

    def __init__(self, inputs=None, op='concat', force_resize=None, leading_index=0, **kwargs):
        self.name = op
        self.kwargs = kwargs
        self.idx = leading_index
        if self.idx != 0:
            inputs = list(inputs)
            inputs[0], inputs[self.idx] = inputs[self.idx], inputs[0]

        if op in self.OPS:
            self.op_name = self.OPS[op]
            self.force_resize = force_resize if force_resize is not None else True
            if self.op_name == 'drop_path':
                self._drop_path_initialization(inputs, **kwargs)
            self.op = None
        elif callable(op):
            self.op_name = op.__name__
            self.op = op
            self.force_resize = force_resize if force_resize is not None else False
        else:
            raise ValueError(f'Combine op must be a callable or a known alias, got {op}!')

    def _drop_path_initialization(self, inputs, drop_prob=0.0, scale=True, layer_scale=1e-06, **kwargs):
        _ = kwargs
        self.drop_prob = drop_prob
        self.scale = scale
        if layer_scale != 0.0:
            x = inputs[1]
            channels = x.shape[1]
            gamma_shape = (1, channels) + (1,) * (x.ndim - 2)
            # deterministic parameter init, same as layer_scale * torch.ones(...)
            self.gamma = layer_scale * jnp.ones(gamma_shape, dtype=x.dtype)
        else:
            self.gamma = None

    def __call__(self, inputs):
        inputs = list(inputs)
        if self.idx != 0:
            inputs[0], inputs[self.idx] = inputs[self.idx], inputs[0]

        # TODO(synk): spatial_resize (zero-pad / center-crop) glue only matters for
        # mismatched spatial shapes; inputs here share spatial shape so it is a no-op.

        if self.op is not None:                      # user-supplied callable
            return self.op(inputs)
        if self.op_name == 'concat':
            return pallas_concat(inputs)
        if self.op_name in ('sum', 'mul', 'mean'):
            # NOTE: torch.mean(list) in the original source is buggy; we implement the
            # intended elementwise average across inputs.
            return pallas_elementwise(self.op_name, inputs)
        if self.op_name == 'drop_path':
            # TODO(synk): training-mode bernoulli batch-dropping not implemented
            # (module is exercised in eval mode, where the drop_prob path is skipped).
            a, x = inputs
            if self.gamma is None:
                return pallas_elementwise('sum', [a, x])
            return pallas_drop_path(a, x, self.gamma)
        raise ValueError(self.op_name)


# ----------------------------------------------------------------------------- main

if __name__ == "__main__":
    key = jax.random.PRNGKey(0)
    ks = jax.random.split(key, 8)
    # small NCHW inputs: batch=2, channels=4, spatial=16x16 (exercise the jnp fast path)
    x1 = jax.random.normal(ks[0], (2, 4, 16, 16), dtype=jnp.float32)
    x2 = jax.random.normal(ks[1], (2, 4, 16, 16), dtype=jnp.float32)
    x3 = jax.random.normal(ks[2], (2, 6, 16, 16), dtype=jnp.float32)      # unaligned channels
    bias = jax.random.normal(ks[3], (1, 4, 1, 1), dtype=jnp.float32)       # per-channel operand
    # larger NCHW inputs: exercise the Pallas kernels (above the fast-path threshold)
    y1 = jax.random.normal(ks[4], (2, 8, 64, 64), dtype=jnp.float32)
    y2 = jax.random.normal(ks[5], (2, 8, 64, 64), dtype=jnp.float32)
    y3 = jax.random.normal(ks[6], (2, 6, 64, 64), dtype=jnp.float32)       # misaligned channels
    ybias = jax.random.normal(ks[7], (1, 8, 1, 1), dtype=jnp.float32)

    ok = True

    def check(out, ref, atol=1e-6):
        global ok
        out = jax.block_until_ready(out)
        ok &= bool(jnp.allclose(out, ref, atol=atol))

    # ---- small shapes (jnp fast path) ----
    check(Combine([x1, x2], op='concat')([x1, x2]), jnp.concatenate([x1, x2], axis=1))
    check(Combine([x1, x3], op='|')([x1, x3]), jnp.concatenate([x1, x3], axis=1))
    check(Combine([x1, x2], op='+')([x1, x2]), x1 + x2)
    check(Combine([x1, bias], op='+')([x1, bias]), x1 + bias)
    check(Combine([x1, x2], op='*')([x1, x2]), x1 * x2)
    check(Combine([x1, x2], op='mean')([x1, x2]), 0.5 * (x1 + x2))
    check(Combine([x1, x2], op='drop_path')([x1, x2]), x1 + 1e-6 * x2)

    # ---- larger shapes (Pallas kernels) ----
    check(Combine([y1, y2], op='concat')([y1, y2]), jnp.concatenate([y1, y2], axis=1))       # concurrent DMAs
    check(Combine([y3, y1], op='|')([y3, y1]), jnp.concatenate([y3, y1], axis=1))            # serialized DMAs
    check(Combine([y1, y2], op='+')([y1, y2]), y1 + y2)                                      # lane-dense path
    check(Combine([y1, ybias], op='+')([y1, ybias]), y1 + ybias)                             # rowvec operand
    check(Combine([y1, y2], op='*')([y1, y2]), y1 * y2)
    check(Combine([y1, y2], op='mean')([y1, y2]), 0.5 * (y1 + y2))
    check(Combine([y1, y2], op='drop_path')([y1, y2]), y1 + 1e-6 * y2)

    print("KERNEL_OK" if ok else "KERNEL_MISMATCH")
</pallas_src>

<mosaic_0001>
module attributes {stable_mosaic.version = 11 : i64} {
  func.func @kernel(%arg0: memref<2x8x4096xf32, #tpu.memory_space<any>>, %arg1: memref<2x8x4096xf32, #tpu.memory_space<any>>, %arg2: memref<2x16x4096xf32, #tpu.memory_space<any>>, %arg3: memref<2x!tpu.dma_semaphore, #tpu.memory_space<semaphore_mem>>) attributes {dimension_semantics = [], scalar_prefetch = 0 : i64, scratch_operands = 1 : i64, tpu.core_type = #tpu.core_type<tc>} {
    %c0_i32 = arith.constant 0 : i32
    %c0_i32_0 = arith.constant 0 : i32
    %c0_i32_1 = arith.constant 0 : i32
    %c0_i32_2 = arith.constant 0 : i32
    %0 = tpu.memref_slice %arg2[%c0_i32_0, %c0_i32_1, %c0_i32_2] : memref<2x16x4096xf32, #tpu.memory_space<any>> -> memref<2x8x4096xf32, #tpu.memory_space<any>>
    %1 = tpu.memref_slice %arg3[%c0_i32] : memref<2x!tpu.dma_semaphore, #tpu.memory_space<semaphore_mem>> -> memref<1x!tpu.dma_semaphore, #tpu.memory_space<semaphore_mem>>
    %2 = tpu.memref_squeeze %1 : memref<1x!tpu.dma_semaphore, #tpu.memory_space<semaphore_mem>> -> memref<!tpu.dma_semaphore, #tpu.memory_space<semaphore_mem>>
    tpu.enqueue_dma source(%arg0 : memref<2x8x4096xf32, #tpu.memory_space<any>>) target(%0 : memref<2x8x4096xf32, #tpu.memory_space<any>>) target_semaphore(%2 : memref<!tpu.dma_semaphore, #tpu.memory_space<semaphore_mem>>)
    %c1_i32 = arith.constant 1 : i32
    %c0_i32_3 = arith.constant 0 : i32
    %c8_i32 = arith.constant 8 : i32
    %c0_i32_4 = arith.constant 0 : i32
    %3 = tpu.memref_slice %arg2[%c0_i32_3, %c8_i32, %c0_i32_4] : memref<2x16x4096xf32, #tpu.memory_space<any>> -> memref<2x8x4096xf32, #tpu.memory_space<any>>
    %4 = tpu.memref_slice %arg3[%c1_i32] : memref<2x!tpu.dma_semaphore, #tpu.memory_space<semaphore_mem>> -> memref<1x!tpu.dma_semaphore, #tpu.memory_space<semaphore_mem>>
    %5 = tpu.memref_squeeze %4 : memref<1x!tpu.dma_semaphore, #tpu.memory_space<semaphore_mem>> -> memref<!tpu.dma_semaphore, #tpu.memory_space<semaphore_mem>>
    tpu.enqueue_dma source(%arg1 : memref<2x8x4096xf32, #tpu.memory_space<any>>) target(%3 : memref<2x8x4096xf32, #tpu.memory_space<any>>) target_semaphore(%5 : memref<!tpu.dma_semaphore, #tpu.memory_space<semaphore_mem>>)
    %c0_i32_5 = arith.constant 0 : i32
    %c0_i32_6 = arith.constant 0 : i32
    %c0_i32_7 = arith.constant 0 : i32
    %c0_i32_8 = arith.constant 0 : i32
    %6 = tpu.memref_slice %arg2[%c0_i32_6, %c0_i32_7, %c0_i32_8] : memref<2x16x4096xf32, #tpu.memory_space<any>> -> memref<2x8x4096xf32, #tpu.memory_space<any>>
    %7 = tpu.memref_slice %arg3[%c0_i32_5] : memref<2x!tpu.dma_semaphore, #tpu.memory_space<semaphore_mem>> -> memref<1x!tpu.dma_semaphore, #tpu.memory_space<semaphore_mem>>
    %8 = tpu.memref_squeeze %7 : memref<1x!tpu.dma_semaphore, #tpu.memory_space<semaphore_mem>> -> memref<!tpu.dma_semaphore, #tpu.memory_space<semaphore_mem>>
    tpu.wait_dma2 semaphore(%8 : memref<!tpu.dma_semaphore, #tpu.memory_space<semaphore_mem>>) src(%arg0 : memref<2x8x4096xf32, #tpu.memory_space<any>>) dst(%6 : memref<2x8x4096xf32, #tpu.memory_space<any>>)
    %c1_i32_9 = arith.constant 1 : i32
    %c0_i32_10 = arith.constant 0 : i32
    %c8_i32_11 = arith.constant 8 : i32
    %c0_i32_12 = arith.constant 0 : i32
    %9 = tpu.memref_slice %arg2[%c0_i32_10, %c8_i32_11, %c0_i32_12] : memref<2x16x4096xf32, #tpu.memory_space<any>> -> memref<2x8x4096xf32, #tpu.memory_space<any>>
    %10 = tpu.memref_slice %arg3[%c1_i32_9] : memref<2x!tpu.dma_semaphore, #tpu.memory_space<semaphore_mem>> -> memref<1x!tpu.dma_semaphore, #tpu.memory_space<semaphore_mem>>
    %11 = tpu.memref_squeeze %10 : memref<1x!tpu.dma_semaphore, #tpu.memory_space<semaphore_mem>> -> memref<!tpu.dma_semaphore, #tpu.memory_space<semaphore_mem>>
    tpu.wait_dma2 semaphore(%11 : memref<!tpu.dma_semaphore, #tpu.memory_space<semaphore_mem>>) src(%arg1 : memref<2x8x4096xf32, #tpu.memory_space<any>>) dst(%9 : memref<2x8x4096xf32, #tpu.memory_space<any>>)
    return
  }
}

</mosaic_0001>

<llo_original>
// kernel: tpu_custom_call.1
$region0: #{tpu_custom_call.1}
  #allocation0 [shape = 'u32[]', space=smem, size = 0x4, offset = 0x4, fixed_abs, tag = 'smem constant byte address 0x4 - core index']
  #allocation1 [shape = 'u32[72,128]{1,0:T(1,128)}', space=vmem, size = 0x9000, scoped, tag = 'internal scratch']
  #allocation2 [shape = 's32[2]{0}', space=sflag, size = 0x8, scoped, tag = 'scratch operand']
  #allocation3 [shape = 's32[]', space=sflag, size = 0x4, offset = 0, fixed_abs, tag = 'sflag constant byte address 0x0 - dummy sync flag']
  #allocation5 [shape = 's32[]', space=sflag, size = 0x4, offset = 0, fixed_abs, tag = 'sflag constant byte address 0x0 - dummy sync flag']
  %s0 = inlined_call_operand.hbm [shape: f32[2,8,4096], index: 0, kind: input, shape index: {}]
  %s1 = inlined_call_operand.hbm [shape: f32[2,8,4096], index: 1, kind: input, shape index: {}]
  %s2 = inlined_call_operand.hbm [shape: f32[2,16,4096], index: 2, kind: output, shape index: {}]
  %s3 = sld [smem:[#allocation0]]
  $region2: #{tpu_custom_call.1} parent=0
    _
  %s5 = ssub.s32 1, %s3
  %s6 = scalar_select 0, %s5, %s3
  $region1: #{tpu_custom_call.1} parent=0
    #allocation4 [shape = 'u32[3]{0}', space=smem, size = 0xc, scoped, tag = 'DMA stride descriptor']
    #allocation6 [shape = 'u32[3]{0}', space=smem, size = 0xc, scoped, tag = 'DMA stride descriptor']
    %s8 = sshll.u32 1, 14
    %s9 = sxor.u32 4294967295, %s8
    %s11 = sshll.u32 %s0, 4
    %s12 = int_to_ptr.hbm [resolvable:$true] %s11
    %s13 = sshll.u32 %s2, 4
    %s14 = int_to_ptr.hbm [resolvable:$true] %s13
    %18 = sst [smem:[#allocation4]] 4096
    %s19 = scalar_lea.smem [#allocation4], 1
    %20 = sst [smem:[%s19]] 8192
    %s21 = scalar_lea.smem [#allocation4], 2
    %22 = sst [smem:[%s21]] 256
    %24 = dma.general %s12, 8192, %s14, [#allocation2], [#allocation3], [#allocation4], 0, 0
    %s25 = scalar_lea.hbm %s2, 256
    %s26 = scalar_lea.sflag [#allocation2], 1
    %s28 = sshll.u32 1, 14
    %s29 = sxor.u32 4294967295, %s28
    %s31 = sshll.u32 %s1, 4
    %s32 = int_to_ptr.hbm [resolvable:$true] %s31
    %s33 = sshll.u32 %s25, 4
    %s34 = int_to_ptr.hbm [resolvable:$true] %s33
    %38 = sst [smem:[#allocation6]] 4096
    %s39 = scalar_lea.smem [#allocation6], 1
    %40 = sst [smem:[%s39]] 8192
    %s41 = scalar_lea.smem [#allocation6], 2
    %42 = sst [smem:[%s41]] 256
    %44 = dma.general %s32, 8192, %s34, %s26, [#allocation5], [#allocation6], 0, 0
    %s45 = smul.u32 8, 2
    %s46 = smul.u32 %s45, 1
    %s47 = smul.u32 %s46, 32
    %s48 = sshll.u32 %s47, 4
    %49 = dma.done [#allocation2], %s48
    %s50 = sshll.u32 %s47, 4
    %51 = dma.done %s26, %s50
  %52 = vsyncmov [#allocation2]
  %s53 = vpop.sfrf %52
  %p54 = scmp.eq.s32.totalorder %s53, 0
  %p55 = pneg %p54
  %57 = shalt.err (%p55)
  %s58 = scalar_lea.sflag [#allocation2], 1
  %59 = vsyncmov %s58
  %s60 = vpop.sfrf %59
  %p61 = scmp.eq.s32.totalorder %s60, 0
  %p62 = pneg %p61
  %64 = shalt.err (%p62)

</llo_original>
